<compile_context>
chip_gen: v7x
topology: tpu7x:2x2x1
jax: 0.10.0
libtpu: 0.0.40
codegen_flags: <defaults>
</compile_context>

<pallas_src>
import functools

import jax
import jax.numpy as jnp
from jax import lax
from jax.experimental import pallas as pl
from jax.experimental.pallas import tpu as pltpu

_LANES = 128
_SUBLANES = 8


def _dura_kernel(h_ref, r_ref, t_ref, out_ref, *, total_rows, block_rows,
                 blocks_per_chunk, needs_mask):
    p = pl.program_id(0)   # chunk (core) axis
    i = pl.program_id(1)   # row-block sweep within the chunk

    @pl.when(i == 0)
    def _init():
        out_ref[...] = jnp.zeros_like(out_ref)

    h = h_ref[...].astype(jnp.float32)
    r = r_ref[...].astype(jnp.float32)
    t = t_ref[...].astype(jnp.float32)

    # Fused form: 0.5*(h^2+t^2) + 1.5*(h^2 r^2 + t^2 r^2)
    #           = (h^2 + t^2) * (0.5 + 1.5 * r^2)
    term = (h * h + t * t) * (0.5 + 1.5 * (r * r))       # (block_rows, D) VPU

    if needs_mask:
        # Select (not multiply) so garbage/NaN in the OOB tail cannot leak in.
        offset = (p * blocks_per_chunk + i) * block_rows
        rows = lax.broadcasted_iota(jnp.int32, term.shape, 0)
        term = jnp.where(rows + offset < total_rows, term, 0.0)

    br, d = term.shape
    # Fold sublane groups with plain vreg adds (no per-step XLU reduction).
    partial = term.reshape(br // _SUBLANES, _SUBLANES, d).sum(axis=0)  # (8, D)
    out_ref[...] += partial[None, :, :]


def _vmem_capacity_bytes() -> int:
    try:
        return int(pltpu.get_tpu_info().vmem_capacity_bytes)
    except Exception:  # interpret mode / older runtimes
        return 64 * 1024 * 1024


def _num_tensorcores() -> int:
    """Best-effort TensorCore-per-chip count (v7x has 2); conservative 1."""
    try:
        info = pltpu.get_tpu_info()
        for name in ("num_cores", "core_count", "num_tensorcores",
                     "cores_per_chip"):
            v = getattr(info, name, None)
            if isinstance(v, int) and 1 <= v <= 8:
                return v
    except Exception:
        pass
    try:
        v = getattr(jax.devices()[0], "num_cores", None)
        if isinstance(v, int) and 1 <= v <= 8:
            return v
    except Exception:
        pass
    return 1


def dura_norm_sum(h: jax.Array, r: jax.Array, t: jax.Array,
                  *, block_rows: int | None = None) -> jax.Array:
    """Returns 0.5*sum(t^2+h^2) + 1.5*sum(h^2 r^2 + t^2 r^2) as a scalar f32."""
    B, D = h.shape
    assert r.shape == (B, D) and t.shape == (B, D)
    total = B * D

    itemsize = jnp.dtype(h.dtype).itemsize
    # Sublane packing: f32 -> 8 rows, bf16 -> 16, int8/fp8 -> 32.
    row_align = max(_SUBLANES, 32 // max(1, itemsize))

    # Lane-dense view (free bitcast reshape for contiguous row-major data).
    if D % _LANES != 0 and total % _LANES == 0:
        Bk, Dk = total // _LANES, _LANES
        h = h.reshape(Bk, Dk)
        r = r.reshape(Bk, Dk)
        t = t.reshape(Bk, Dk)
    else:
        Bk, Dk = B, D

    vmem_cap = _vmem_capacity_bytes()
    # v5e/v6e (128 MiB VMEM) -> 64 MiB scoped limit; v7x (64 MiB) -> 32 MiB.
    vmem_limit = min(vmem_cap // 2, 96 * 1024 * 1024)
    headroom = 4 * 1024 * 1024
    budget = max(vmem_limit - headroom, 2 * 1024 * 1024)

    if block_rows is None:
        # 3 inputs x 2 pipeline buffers (raw dtype) + ~5 live f32 temporaries
        # (h/r/t casts + fused term + select) per row of the tile.
        bytes_per_row = 6 * Dk * itemsize + 5 * Dk * 4
        block_rows = budget // bytes_per_row
        block_rows = max(row_align, (block_rows // row_align) * row_align)
    assert block_rows % row_align == 0, (
        f"block_rows must be a multiple of {row_align} for dtype {h.dtype}")
    block_rows = min(block_rows, pl.cdiv(Bk, row_align) * row_align)

    num_blocks = pl.cdiv(Bk, block_rows)

    # Open the chunk (core) axis only on multi-TensorCore chips (v7x).
    cores = _num_tensorcores()
    num_chunks = 2 if (cores >= 2 and num_blocks >= 2) else 1
    blocks_per_chunk = pl.cdiv(num_blocks, num_chunks)

    # Static: do any grid steps touch rows past the true end (ragged tail or
    # chunk rounding)?  If not, the mask is never traced.
    needs_mask = (num_chunks * blocks_per_chunk * block_rows) != Bk
    last_block = num_blocks - 1

    def in_map(p, i):
        # Clamp so fully-redundant (rounding) steps just re-read the last
        # valid block; the in-kernel row mask zeroes their contribution.
        return (jnp.minimum(p * blocks_per_chunk + i, last_block), 0)

    blk = pl.BlockSpec((block_rows, Dk), in_map)

    if num_chunks > 1 and hasattr(pltpu, "CORE_PARALLEL"):
        dims = (pltpu.CORE_PARALLEL, pltpu.ARBITRARY)   # real 2-TC sharding
    elif num_chunks > 1:
        dims = ("parallel", "arbitrary")
    else:
        dims = ("arbitrary", "arbitrary")

    footprint = (block_rows * Dk * (6 * itemsize + 5 * 4)
                 + num_chunks * 2 * _SUBLANES * Dk * 4)
    vmem_limit = min(vmem_cap, max(vmem_limit, footprint + headroom))

    kernel = functools.partial(
        _dura_kernel, total_rows=Bk, block_rows=block_rows,
        blocks_per_chunk=blocks_per_chunk, needs_mask=needs_mask)

    partials = pl.pallas_call(
        kernel,
        out_shape=jax.ShapeDtypeStruct((num_chunks, _SUBLANES, Dk), jnp.float32),
        grid_spec=pltpu.PrefetchScalarGridSpec(
            num_scalar_prefetch=0,
            grid=(num_chunks, blocks_per_chunk),
            in_specs=[blk, blk, blk],
            out_specs=pl.BlockSpec((1, _SUBLANES, Dk), lambda p, i: (p, 0, 0)),
        ),
        compiler_params=pltpu.CompilerParams(
            dimension_semantics=dims,
            vmem_limit_bytes=int(vmem_limit),
        ),
        cost_estimate=pl.CostEstimate(
            flops=8 * total,
            transcendentals=0,
            bytes_accessed=3 * total * itemsize
                           + num_chunks * _SUBLANES * Dk * 4,
        ),
    )(h, r, t)

    # Single tiny cross-lane/sublane reduction over the (chunks, 8, Dk) slab.
    return jnp.sum(partials)


def dura(factors, weight: float, *, use_pallas: bool | None = None) -> jax.Array:
    """DURA.forward: weight * norm / h.shape[0]."""
    h, r, t = factors
    B = h.shape[0]
    if use_pallas is None:
        # pallas_call launch/pipeline warm-up dominates tiny regularizer
        # batches; let XLA fuse those and use the kernel for big ones.
        use_pallas = h.size >= (1 << 20)
    if use_pallas:
        norm = dura_norm_sum(h, r, t)
    else:
        hf, rf, tf = (x.astype(jnp.float32) for x in (h, r, t))
        norm = (0.5 * jnp.sum(tf * tf + hf * hf)
                + 1.5 * jnp.sum(hf * hf * rf * rf + tf * tf * rf * rf))
    return weight * norm / B


def _dura_ref(factors, weight: float) -> jax.Array:
    h, r, t = (f.astype(jnp.float32) for f in factors)
    norm = 0.5 * jnp.sum(t ** 2 + h ** 2)
    norm = norm + 1.5 * jnp.sum(h ** 2 * r ** 2 + t ** 2 * r ** 2)
    return weight * norm / h.shape[0]


if __name__ == "__main__":
    key = jax.random.PRNGKey(0)
    weight = 0.1

    # Small shapes covering: lane-aligned D, ragged tail with D < 128 (native
    # layout), free lane-dense reshape with ragged tail, and bf16 packing.
    cases = [
        (256, 128, jnp.float32),   # D == 128, no mask
        (21, 96, jnp.float32),     # B*D % 128 != 0 -> native layout + row mask
        (200, 96, jnp.float32),    # B*D % 128 == 0 -> (150, 128) view + mask
        (64, 64, jnp.bfloat16),    # bf16 -> (32, 128) lane-dense view
    ]
    for idx, (B, D, dt) in enumerate(cases):
        k_h, k_r, k_t = jax.random.split(jax.random.fold_in(key, idx), 3)
        h = jax.random.normal(k_h, (B, D), dtype=jnp.float32).astype(dt)
        r = jax.random.normal(k_r, (B, D), dtype=jnp.float32).astype(dt)
        t = jax.random.normal(k_t, (B, D), dtype=jnp.float32).astype(dt)

        out = jax.block_until_ready(dura((h, r, t), weight, use_pallas=True))
        ref = jax.block_until_ready(_dura_ref((h, r, t), weight))
        assert jnp.allclose(out, ref, rtol=5e-5, atol=1e-4), (B, D, dt, out, ref)

        # Auto-gated path (tiny input -> plain XLA) must agree too.
        out_auto = jax.block_until_ready(dura((h, r, t), weight))
        assert jnp.allclose(out_auto, ref, rtol=5e-5, atol=1e-4), (B, D, dt)

    # Multi-block accumulation + in-kernel tail masking (forced small tile).
    B, D = 44, 128
    k_h, k_r, k_t = jax.random.split(jax.random.fold_in(key, 99), 3)
    h = jax.random.normal(k_h, (B, D), dtype=jnp.float32)
    r = jax.random.normal(k_r, (B, D), dtype=jnp.float32)
    t = jax.random.normal(k_t, (B, D), dtype=jnp.float32)
    norm = jax.block_until_ready(dura_norm_sum(h, r, t, block_rows=16))
    ref_norm = (0.5 * jnp.sum(t * t + h * h)
                + 1.5 * jnp.sum(h * h * r * r + t * t * r * r))
    assert jnp.allclose(norm, ref_norm, rtol=5e-5, atol=1e-4), (norm, ref_norm)

    print("KERNEL_OK")
</pallas_src>

<mosaic_0001>
module attributes {stable_mosaic.version = 11 : i64} {
  func.func @_dura_kernel(%arg0: i32, %arg1: i32, %arg2: memref<256x128xf32, #tpu.memory_space<vmem>>, %arg3: memref<256x128xf32, #tpu.memory_space<vmem>>, %arg4: memref<256x128xf32, #tpu.memory_space<vmem>>, %arg5: memref<1x8x128xf32, #tpu.memory_space<vmem>>) attributes {dimension_semantics = [#tpu.dimension_semantics<arbitrary>, #tpu.dimension_semantics<arbitrary>], iteration_bounds = array<i64: 1, 1>, scalar_prefetch = 0 : i64, scratch_operands = 0 : i64, tpu.core_type = #tpu.core_type<tc>, window_params = [{transform_indices = @transform_0, window_bounds = array<i64: 256, 128>}, {transform_indices = @transform_1, window_bounds = array<i64: 256, 128>}, {transform_indices = @transform_2, window_bounds = array<i64: 256, 128>}, {transform_indices = @transform_3, window_bounds = array<i64: 1, 8, 128>}]} {
    %c0_i32 = arith.constant 0 : i32
    %0 = arith.cmpi eq, %arg1, %c0_i32 : i32
    %1 = arith.extui %0 : i1 to i32
    %c0_i32_0 = arith.constant 0 : i32
    %2 = arith.cmpi ne, %1, %c0_i32_0 : i32
    scf.if %2 {
      %cst_14 = arith.constant 0.000000e+00 : f32
      %21 = vector.broadcast %cst_14 : f32 to vector<1x8x128xf32>
      %c0_15 = arith.constant 0 : index
      %c0_16 = arith.constant 0 : index
      %c0_17 = arith.constant 0 : index
      %22 = vector.load %arg5[%c0_15, %c0_16, %c0_17] : memref<1x8x128xf32, #tpu.memory_space<vmem>>, vector<1x8x128xf32>
      tpu.vector_store %arg5[%c0_15, %c0_16, %c0_17], %21 {strides = array<i32>} : memref<1x8x128xf32, #tpu.memory_space<vmem>>, vector<1x8x128xf32>,
    } else {
    }
    %c0 = arith.constant 0 : index
    %c0_1 = arith.constant 0 : index
    %3 = vector.load %arg2[%c0, %c0_1] : memref<256x128xf32, #tpu.memory_space<vmem>>, vector<256x128xf32>
    %c0_2 = arith.constant 0 : index
    %c0_3 = arith.constant 0 : index
    %4 = vector.load %arg3[%c0_2, %c0_3] : memref<256x128xf32, #tpu.memory_space<vmem>>, vector<256x128xf32>
    %c0_4 = arith.constant 0 : index
    %c0_5 = arith.constant 0 : index
    %5 = vector.load %arg4[%c0_4, %c0_5] : memref<256x128xf32, #tpu.memory_space<vmem>>, vector<256x128xf32>
    %6 = arith.mulf %3, %3 : vector<256x128xf32>
    %7 = arith.mulf %5, %5 : vector<256x128xf32>
    %8 = arith.addf %6, %7 : vector<256x128xf32>
    %9 = arith.mulf %4, %4 : vector<256x128xf32>
    %cst = arith.constant 1.500000e+00 : f32
    %10 = vector.broadcast %cst : f32 to vector<256x128xf32>
    %11 = arith.mulf %10, %9 : vector<256x128xf32>
    %cst_6 = arith.constant 5.000000e-01 : f32
    %12 = vector.broadcast %cst_6 : f32 to vector<256x128xf32>
    %13 = arith.addf %12, %11 : vector<256x128xf32>
    %14 = arith.mulf %8, %13 : vector<256x128xf32>
    %15 = vector.shape_cast %14 : vector<256x128xf32> to vector<32x8x128xf32>
    %cst_7 = arith.constant dense<0.000000e+00> : vector<8x128xf32>
    %16 = vector.multi_reduction <add>, %15, %cst_7 [0] : vector<32x8x128xf32> to vector<8x128xf32>
    %c0_8 = arith.constant 0 : index
    %c0_9 = arith.constant 0 : index
    %c0_10 = arith.constant 0 : index
    %17 = vector.load %arg5[%c0_8, %c0_9, %c0_10] : memref<1x8x128xf32, #tpu.memory_space<vmem>>, vector<1x8x128xf32>
    %18 = vector.shape_cast %16 : vector<8x128xf32> to vector<1x8x128xf32>
    %19 = arith.addf %17, %18 : vector<1x8x128xf32>
    %c0_11 = arith.constant 0 : index
    %c0_12 = arith.constant 0 : index
    %c0_13 = arith.constant 0 : index
    %20 = vector.load %arg5[%c0_11, %c0_12, %c0_13] : memref<1x8x128xf32, #tpu.memory_space<vmem>>, vector<1x8x128xf32>
    tpu.vector_store %arg5[%c0_11, %c0_12, %c0_13], %19 {strides = array<i32>} : memref<1x8x128xf32, #tpu.memory_space<vmem>>, vector<1x8x128xf32>,
    return
  }
  func.func @transform_0(%arg0: i32, %arg1: i32) -> (i32, i32) {
    %c1_i32 = arith.constant 1 : i32
    %0 = arith.muli %arg0, %c1_i32 : i32
    %1 = arith.addi %0, %arg1 : i32
    %c0_i32 = arith.constant 0 : i32
    %2 = arith.minsi %1, %c0_i32 : i32
    %c0_i32_0 = arith.constant 0 : i32
    %c0_i32_1 = arith.constant 0 : i32
    return %2, %c0_i32_0 : i32, i32
  }
  func.func @transform_1(%arg0: i32, %arg1: i32) -> (i32, i32) {
    %c1_i32 = arith.constant 1 : i32
    %0 = arith.muli %arg0, %c1_i32 : i32
    %1 = arith.addi %0, %arg1 : i32
    %c0_i32 = arith.constant 0 : i32
    %2 = arith.minsi %1, %c0_i32 : i32
    %c0_i32_0 = arith.constant 0 : i32
    %c0_i32_1 = arith.constant 0 : i32
    return %2, %c0_i32_0 : i32, i32
  }
  func.func @transform_2(%arg0: i32, %arg1: i32) -> (i32, i32) {
    %c1_i32 = arith.constant 1 : i32
    %0 = arith.muli %arg0, %c1_i32 : i32
    %1 = arith.addi %0, %arg1 : i32
    %c0_i32 = arith.constant 0 : i32
    %2 = arith.minsi %1, %c0_i32 : i32
    %c0_i32_0 = arith.constant 0 : i32
    %c0_i32_1 = arith.constant 0 : i32
    return %2, %c0_i32_0 : i32, i32
  }
  func.func @transform_3(%arg0: i32, %arg1: i32) -> (i32, i32, i32) {
    %c0_i32 = arith.constant 0 : i32
    %c0_i32_0 = arith.constant 0 : i32
    %c0_i32_1 = arith.constant 0 : i32
    return %arg0, %c0_i32, %c0_i32_0 : i32, i32, i32
  }
}

</mosaic_0001>

<llo_original>
// kernel: tpu_custom_call.1
$region0: #{tpu_custom_call.1}
  #allocation0 [shape = 'u32[]', space=smem, size = 0x4, offset = 0x4, fixed_abs, tag = 'smem constant byte address 0x4 - core index']
  #allocation1 [shape = 'u32[144,128]{1,0:T(1,128)}', space=vmem, size = 0x12000, scoped, tag = 'internal scratch']
  %s0 = inlined_call_operand.hbm [shape: f32[256,128], index: 0, kind: input, shape index: {}]
  %s1 = inlined_call_operand.hbm [shape: f32[256,128], index: 1, kind: input, shape index: {}]
  %s2 = inlined_call_operand.hbm [shape: f32[256,128], index: 2, kind: input, shape index: {}]
  %s3 = inlined_call_operand.hbm [shape: f32[1,8,128], index: 3, kind: output, shape index: {}]
  %s4 = sld [smem:[#allocation0]]
  $region38: #{tpu_custom_call.1} parent=0
    _
  %s6 = ssub.s32 1, %s4
  %s7 = scalar_select 0, %s6, %s4
  $region1: #{tpu_custom_call.1} parent=0
    #allocation2 [shape = 'u8[131072]{0}', space=vmem, size = 0x20000, scoped, tag = 'input window, operand 0, single buffered']
    #allocation3 [shape = 's32[1]{0}', space=sflag, size = 0x4, scoped, tag = 'scoped memory for tpu_custom_call.1']
    #allocation4 [shape = 's32[1]{0}', space=sflag, size = 0x4, scoped, tag = 'scoped memory for tpu_custom_call.1']
    #allocation5 [shape = 'u8[131072]{0}', space=vmem, size = 0x20000, scoped, tag = 'input window, operand 1, single buffered']
    #allocation6 [shape = 's32[1]{0}', space=sflag, size = 0x4, scoped, tag = 'scoped memory for tpu_custom_call.1']
    #allocation7 [shape = 'u8[131072]{0}', space=vmem, size = 0x20000, scoped, tag = 'input window, operand 2, single buffered']
    #allocation8 [shape = 'u8[4096]{0}', space=vmem, size = 0x1000, scoped, tag = 'output window, operand 0, single buffered']
    %8 = vsyncpa [#allocation3], 0
    %9 = vsyncpa [#allocation6], 0
    %10 = vsyncpa [#allocation4], 0
    // Predicated region
    $region2: #{tpu_custom_call.1} parent=1 // pred_check
      _
    $region3: #{tpu_custom_call.1} parent=1 // pred_check_branch
      %12 = sbr.rel (0) target = $region5
    $region4: #{tpu_custom_call.1} parent=1 // pred_region
      %s13 = sadd.s32 0, 0
      %p14 = scmp.lt.s32.totalorder %s13, 0
      %s15 = scalar_select %p14, %s13, 0
      %s16 = smul.u32 32, %s15
      %s18 = ssub.s32 4096, 4096
      %19 = vsyncadd [#allocation3], %s18
      %s20 = smul.addr %s16, 128
      %s21 = scalar_lea.hbm %s0, %s20
      %s22 = sshll.u32 [#allocation2], 4
      %s23 = int_to_ptr.vmem [resolvable:$true] %s22
      %28 = dma.hbm_to_vmem [thread:$0]  %s21, 4096, %s23, [#allocation3], 128, 128, 8
    $region5: #{tpu_custom_call.1} parent=1 // pred_fallthru
      _
    // Predicated region
    $region6: #{tpu_custom_call.1} parent=1 // pred_check
      _
    $region7: #{tpu_custom_call.1} parent=1 // pred_check_branch
      %30 = sbr.rel (0) target = $region9
    $region8: #{tpu_custom_call.1} parent=1 // pred_region
      %s31 = sadd.s32 0, 0
      %p32 = scmp.lt.s32.totalorder %s31, 0
      %s33 = scalar_select %p32, %s31, 0
      %s34 = smul.u32 32, %s33
      %s36 = ssub.s32 4096, 4096
      %37 = vsyncadd [#allocation6], %s36
      %s38 = smul.addr %s34, 128
      %s39 = scalar_lea.hbm %s1, %s38
      %s40 = sshll.u32 [#allocation5], 4
      %s41 = int_to_ptr.vmem [resolvable:$true] %s40
      %46 = dma.hbm_to_vmem [thread:$0]  %s39, 4096, %s41, [#allocation6], 128, 128, 8
    $region9: #{tpu_custom_call.1} parent=1 // pred_fallthru
      _
    // Predicated region
    $region10: #{tpu_custom_call.1} parent=1 // pred_check
      _
    $region11: #{tpu_custom_call.1} parent=1 // pred_check_branch
      %48 = sbr.rel (0) target = $region13
    $region12: #{tpu_custom_call.1} parent=1 // pred_region
      %s49 = sadd.s32 0, 0
      %p50 = scmp.lt.s32.totalorder %s49, 0
      %s51 = scalar_select %p50, %s49, 0
      %s52 = smul.u32 32, %s51
      %s54 = ssub.s32 4096, 4096
      %55 = vsyncadd [#allocation6], %s54
      %s56 = smul.addr %s52, 128
      %s57 = scalar_lea.hbm %s2, %s56
      %s58 = sshll.u32 [#allocation7], 4
      %s59 = int_to_ptr.vmem [resolvable:$true] %s58
      %64 = dma.hbm_to_vmem [thread:$0]  %s57, 4096, %s59, [#allocation6], 128, 128, 8
    $region13: #{tpu_custom_call.1} parent=1 // pred_fallthru
      _
    // Predicated region
    $region14: #{tpu_custom_call.1} parent=1 // pred_check
      _
    $region15: #{tpu_custom_call.1} parent=1 // pred_check_branch
      %66 = sbr.rel (0) target = $region17
    $region16: #{tpu_custom_call.1} parent=1 // pred_region
      %67 = dma.done [#allocation3], 4096
    $region17: #{tpu_custom_call.1} parent=1 // pred_fallthru
      _
    // Predicated region
    $region18: #{tpu_custom_call.1} parent=1 // pred_check
      _
    $region19: #{tpu_custom_call.1} parent=1 // pred_check_branch
      %69 = sbr.rel (0) target = $region21
    $region20: #{tpu_custom_call.1} parent=1 // pred_region
      %70 = dma.done [#allocation6], 4096
    $region21: #{tpu_custom_call.1} parent=1 // pred_fallthru
      _
    // Predicated region
    $region22: #{tpu_custom_call.1} parent=1 // pred_check
      _
    $region23: #{tpu_custom_call.1} parent=1 // pred_check_branch
      %72 = sbr.rel (0) target = $region25
    $region24: #{tpu_custom_call.1} parent=1 // pred_region
      %73 = dma.done [#allocation6], 4096
    $region25: #{tpu_custom_call.1} parent=1 // pred_fallthru
      _
    %s74 = sadd.s32 0, 0
    %p75 = scmp.lt.s32.totalorder %s74, 0
    %s76 = scalar_select %p75, %s74, 0
    %s77 = smul.u32 32, %s76
    %s78 = sadd.s32 0, 0
    %p79 = scmp.lt.s32.totalorder %s78, 0
    %s80 = scalar_select %p79, %s78, 0
    %s81 = smul.u32 32, %s80
    %s82 = sadd.s32 0, 0
    %p83 = scmp.lt.s32.totalorder %s82, 0
    %s84 = scalar_select %p83, %s82, 0
    %s85 = smul.u32 32, %s84
    %p86 = scmp.eq.s32.totalorder 0, 0
    // Predicated region
    $region26: #{tpu_custom_call.1} parent=1 // pred_check
      %p87 = pneg %p86
    $region27: #{tpu_custom_call.1} parent=1 // pred_check_branch
      %89 = sbr.rel (%p87) target = $region29
    $region28: #{tpu_custom_call.1} parent=1 // pred_region
      %90 = vst [vmem:[#allocation8] sm:$0xff] 0.0
    $region29: #{tpu_custom_call.1} parent=1 // pred_fallthru
      _
    %v91 = vld [vmem:[#allocation2] sm:$0xff]
    %v92 = vld [vmem:[#allocation2 + $0x8] sm:$0xff]
    %v93 = vld [vmem:[#allocation2 + $0x10] sm:$0xff]
    %v94 = vld [vmem:[#allocation2 + $0x18] sm:$0xff]
    %v95 = vld [vmem:[#allocation2 + $0x20] sm:$0xff]
    %v96 = vld [vmem:[#allocation2 + $0x28] sm:$0xff]
    %v97 = vld [vmem:[#allocation2 + $0x30] sm:$0xff]
    %v98 = vld [vmem:[#allocation2 + $0x38] sm:$0xff]
    %v99 = vld [vmem:[#allocation2 + $0x40] sm:$0xff]
    %v100 = vld [vmem:[#allocation2 + $0x48] sm:$0xff]
    %v101 = vld [vmem:[#allocation2 + $0x50] sm:$0xff]
    %v102 = vld [vmem:[#allocation2 + $0x58] sm:$0xff]
    %v103 = vld [vmem:[#allocation2 + $0x60] sm:$0xff]
    %v104 = vld [vmem:[#allocation2 + $0x68] sm:$0xff]
    %v105 = vld [vmem:[#allocation2 + $0x70] sm:$0xff]
    %v106 = vld [vmem:[#allocation2 + $0x78] sm:$0xff]
    %v107 = vld [vmem:[#allocation2 + $0x80] sm:$0xff]
    %v108 = vld [vmem:[#allocation2 + $0x88] sm:$0xff]
    %v109 = vld [vmem:[#allocation2 + $0x90] sm:$0xff]
    %v110 = vld [vmem:[#allocation2 + $0x98] sm:$0xff]
    %v111 = vld [vmem:[#allocation2 + $0xa0] sm:$0xff]
    %v112 = vld [vmem:[#allocation2 + $0xa8] sm:$0xff]
    %v113 = vld [vmem:[#allocation2 + $0xb0] sm:$0xff]
    %v114 = vld [vmem:[#allocation2 + $0xb8] sm:$0xff]
    %v115 = vld [vmem:[#allocation2 + $0xc0] sm:$0xff]
    %v116 = vld [vmem:[#allocation2 + $0xc8] sm:$0xff]
    %v117 = vld [vmem:[#allocation2 + $0xd0] sm:$0xff]
    %v118 = vld [vmem:[#allocation2 + $0xd8] sm:$0xff]
    %v119 = vld [vmem:[#allocation2 + $0xe0] sm:$0xff]
    %v120 = vld [vmem:[#allocation2 + $0xe8] sm:$0xff]
    %v121 = vld [vmem:[#allocation2 + $0xf0] sm:$0xff]
    %v122 = vld [vmem:[#allocation2 + $0xf8] sm:$0xff]
    %v123 = vld [vmem:[#allocation5] sm:$0xff]
    %v124 = vld [vmem:[#allocation5 + $0x8] sm:$0xff]
    %v125 = vld [vmem:[#allocation5 + $0x10] sm:$0xff]
    %v126 = vld [vmem:[#allocation5 + $0x18] sm:$0xff]
    %v127 = vld [vmem:[#allocation5 + $0x20] sm:$0xff]
    %v128 = vld [vmem:[#allocation5 + $0x28] sm:$0xff]
    %v129 = vld [vmem:[#allocation5 + $0x30] sm:$0xff]
    %v130 = vld [vmem:[#allocation5 + $0x38] sm:$0xff]
    %v131 = vld [vmem:[#allocation5 + $0x40] sm:$0xff]
    %v132 = vld [vmem:[#allocation5 + $0x48] sm:$0xff]
    %v133 = vld [vmem:[#allocation5 + $0x50] sm:$0xff]
    %v134 = vld [vmem:[#allocation5 + $0x58] sm:$0xff]
    %v135 = vld [vmem:[#allocation5 + $0x60] sm:$0xff]
    %v136 = vld [vmem:[#allocation5 + $0x68] sm:$0xff]
    %v137 = vld [vmem:[#allocation5 + $0x70] sm:$0xff]
    %v138 = vld [vmem:[#allocation5 + $0x78] sm:$0xff]
    %v139 = vld [vmem:[#allocation5 + $0x80] sm:$0xff]
    %v140 = vld [vmem:[#allocation5 + $0x88] sm:$0xff]
    %v141 = vld [vmem:[#allocation5 + $0x90] sm:$0xff]
    %v142 = vld [vmem:[#allocation5 + $0x98] sm:$0xff]
    %v143 = vld [vmem:[#allocation5 + $0xa0] sm:$0xff]
    %v144 = vld [vmem:[#allocation5 + $0xa8] sm:$0xff]
    %v145 = vld [vmem:[#allocation5 + $0xb0] sm:$0xff]
    %v146 = vld [vmem:[#allocation5 + $0xb8] sm:$0xff]
    %v147 = vld [vmem:[#allocation5 + $0xc0] sm:$0xff]
    %v148 = vld [vmem:[#allocation5 + $0xc8] sm:$0xff]
    %v149 = vld [vmem:[#allocation5 + $0xd0] sm:$0xff]
    %v150 = vld [vmem:[#allocation5 + $0xd8] sm:$0xff]
    %v151 = vld [vmem:[#allocation5 + $0xe0] sm:$0xff]
    %v152 = vld [vmem:[#allocation5 + $0xe8] sm:$0xff]
    %v153 = vld [vmem:[#allocation5 + $0xf0] sm:$0xff]
    %v154 = vld [vmem:[#allocation5 + $0xf8] sm:$0xff]
    %v155 = vld [vmem:[#allocation7] sm:$0xff]
    %v156 = vld [vmem:[#allocation7 + $0x8] sm:$0xff]
    %v157 = vld [vmem:[#allocation7 + $0x10] sm:$0xff]
    %v158 = vld [vmem:[#allocation7 + $0x18] sm:$0xff]
    %v159 = vld [vmem:[#allocation7 + $0x20] sm:$0xff]
    %v160 = vld [vmem:[#allocation7 + $0x28] sm:$0xff]
    %v161 = vld [vmem:[#allocation7 + $0x30] sm:$0xff]
    %v162 = vld [vmem:[#allocation7 + $0x38] sm:$0xff]
    %v163 = vld [vmem:[#allocation7 + $0x40] sm:$0xff]
    %v164 = vld [vmem:[#allocation7 + $0x48] sm:$0xff]
    %v165 = vld [vmem:[#allocation7 + $0x50] sm:$0xff]
    %v166 = vld [vmem:[#allocation7 + $0x58] sm:$0xff]
    %v167 = vld [vmem:[#allocation7 + $0x60] sm:$0xff]
    %v168 = vld [vmem:[#allocation7 + $0x68] sm:$0xff]
    %v169 = vld [vmem:[#allocation7 + $0x70] sm:$0xff]
    %v170 = vld [vmem:[#allocation7 + $0x78] sm:$0xff]
    %v171 = vld [vmem:[#allocation7 + $0x80] sm:$0xff]
    %v172 = vld [vmem:[#allocation7 + $0x88] sm:$0xff]
    %v173 = vld [vmem:[#allocation7 + $0x90] sm:$0xff]
    %v174 = vld [vmem:[#allocation7 + $0x98] sm:$0xff]
    %v175 = vld [vmem:[#allocation7 + $0xa0] sm:$0xff]
    %v176 = vld [vmem:[#allocation7 + $0xa8] sm:$0xff]
    %v177 = vld [vmem:[#allocation7 + $0xb0] sm:$0xff]
    %v178 = vld [vmem:[#allocation7 + $0xb8] sm:$0xff]
    %v179 = vld [vmem:[#allocation7 + $0xc0] sm:$0xff]
    %v180 = vld [vmem:[#allocation7 + $0xc8] sm:$0xff]
    %v181 = vld [vmem:[#allocation7 + $0xd0] sm:$0xff]
    %v182 = vld [vmem:[#allocation7 + $0xd8] sm:$0xff]
    %v183 = vld [vmem:[#allocation7 + $0xe0] sm:$0xff]
    %v184 = vld [vmem:[#allocation7 + $0xe8] sm:$0xff]
    %v185 = vld [vmem:[#allocation7 + $0xf0] sm:$0xff]
    %v186 = vld [vmem:[#allocation7 + $0xf8] sm:$0xff]
    %v187 = vmul.f32 %v91, %v91
    %v188 = vmul.f32 %v92, %v92
    %v189 = vmul.f32 %v93, %v93
    %v190 = vmul.f32 %v94, %v94
    %v191 = vmul.f32 %v95, %v95
    %v192 = vmul.f32 %v96, %v96
    %v193 = vmul.f32 %v97, %v97
    %v194 = vmul.f32 %v98, %v98
    %v195 = vmul.f32 %v99, %v99
    %v196 = vmul.f32 %v100, %v100
    %v197 = vmul.f32 %v101, %v101
    %v198 = vmul.f32 %v102, %v102
    %v199 = vmul.f32 %v103, %v103
    %v200 = vmul.f32 %v104, %v104
    %v201 = vmul.f32 %v105, %v105
    %v202 = vmul.f32 %v106, %v106
    %v203 = vmul.f32 %v107, %v107
    %v204 = vmul.f32 %v108, %v108
    %v205 = vmul.f32 %v109, %v109
    %v206 = vmul.f32 %v110, %v110
    %v207 = vmul.f32 %v111, %v111
    %v208 = vmul.f32 %v112, %v112
    %v209 = vmul.f32 %v113, %v113
    %v210 = vmul.f32 %v114, %v114
    %v211 = vmul.f32 %v115, %v115
    %v212 = vmul.f32 %v116, %v116
    %v213 = vmul.f32 %v117, %v117
    %v214 = vmul.f32 %v118, %v118
    %v215 = vmul.f32 %v119, %v119
    %v216 = vmul.f32 %v120, %v120
    %v217 = vmul.f32 %v121, %v121
    %v218 = vmul.f32 %v122, %v122
    %v219 = vmul.f32 %v155, %v155
    %v220 = vmul.f32 %v156, %v156
    %v221 = vmul.f32 %v157, %v157
    %v222 = vmul.f32 %v158, %v158
    %v223 = vmul.f32 %v159, %v159
    %v224 = vmul.f32 %v160, %v160
    %v225 = vmul.f32 %v161, %v161
    %v226 = vmul.f32 %v162, %v162
    %v227 = vmul.f32 %v163, %v163
    %v228 = vmul.f32 %v164, %v164
    %v229 = vmul.f32 %v165, %v165
    %v230 = vmul.f32 %v166, %v166
    %v231 = vmul.f32 %v167, %v167
    %v232 = vmul.f32 %v168, %v168
    %v233 = vmul.f32 %v169, %v169
    %v234 = vmul.f32 %v170, %v170
    %v235 = vmul.f32 %v171, %v171
    %v236 = vmul.f32 %v172, %v172
    %v237 = vmul.f32 %v173, %v173
    %v238 = vmul.f32 %v174, %v174
    %v239 = vmul.f32 %v175, %v175
    %v240 = vmul.f32 %v176, %v176
    %v241 = vmul.f32 %v177, %v177
    %v242 = vmul.f32 %v178, %v178
    %v243 = vmul.f32 %v179, %v179
    %v244 = vmul.f32 %v180, %v180
    %v245 = vmul.f32 %v181, %v181
    %v246 = vmul.f32 %v182, %v182
    %v247 = vmul.f32 %v183, %v183
    %v248 = vmul.f32 %v184, %v184
    %v249 = vmul.f32 %v185, %v185
    %v250 = vmul.f32 %v186, %v186
    %v251 = vadd.f32 %v187, %v219
    %v252 = vadd.f32 %v188, %v220
    %v253 = vadd.f32 %v189, %v221
    %v254 = vadd.f32 %v190, %v222
    %v255 = vadd.f32 %v191, %v223
    %v256 = vadd.f32 %v192, %v224
    %v257 = vadd.f32 %v193, %v225
    %v258 = vadd.f32 %v194, %v226
    %v259 = vadd.f32 %v195, %v227
    %v260 = vadd.f32 %v196, %v228
    %v261 = vadd.f32 %v197, %v229
    %v262 = vadd.f32 %v198, %v230
    %v263 = vadd.f32 %v199, %v231
    %v264 = vadd.f32 %v200, %v232
    %v265 = vadd.f32 %v201, %v233
    %v266 = vadd.f32 %v202, %v234
    %v267 = vadd.f32 %v203, %v235
    %v268 = vadd.f32 %v204, %v236
    %v269 = vadd.f32 %v205, %v237
    %v270 = vadd.f32 %v206, %v238
    %v271 = vadd.f32 %v207, %v239
    %v272 = vadd.f32 %v208, %v240
    %v273 = vadd.f32 %v209, %v241
    %v274 = vadd.f32 %v210, %v242
    %v275 = vadd.f32 %v211, %v243
    %v276 = vadd.f32 %v212, %v244
    %v277 = vadd.f32 %v213, %v245
    %v278 = vadd.f32 %v214, %v246
    %v279 = vadd.f32 %v215, %v247
    %v280 = vadd.f32 %v216, %v248
    %v281 = vadd.f32 %v217, %v249
    %v282 = vadd.f32 %v218, %v250
    %v283 = vmul.f32 %v123, %v123
    %v284 = vmul.f32 %v124, %v124
    %v285 = vmul.f32 %v125, %v125
    %v286 = vmul.f32 %v126, %v126
    %v287 = vmul.f32 %v127, %v127
    %v288 = vmul.f32 %v128, %v128
    %v289 = vmul.f32 %v129, %v129
    %v290 = vmul.f32 %v130, %v130
    %v291 = vmul.f32 %v131, %v131
    %v292 = vmul.f32 %v132, %v132
    %v293 = vmul.f32 %v133, %v133
    %v294 = vmul.f32 %v134, %v134
    %v295 = vmul.f32 %v135, %v135
    %v296 = vmul.f32 %v136, %v136
    %v297 = vmul.f32 %v137, %v137
    %v298 = vmul.f32 %v138, %v138
    %v299 = vmul.f32 %v139, %v139
    %v300 = vmul.f32 %v140, %v140
    %v301 = vmul.f32 %v141, %v141
    %v302 = vmul.f32 %v142, %v142
    %v303 = vmul.f32 %v143, %v143
    %v304 = vmul.f32 %v144, %v144
    %v305 = vmul.f32 %v145, %v145
    %v306 = vmul.f32 %v146, %v146
    %v307 = vmul.f32 %v147, %v147
    %v308 = vmul.f32 %v148, %v148
    %v309 = vmul.f32 %v149, %v149
    %v310 = vmul.f32 %v150, %v150
    %v311 = vmul.f32 %v151, %v151
    %v312 = vmul.f32 %v152, %v152
    %v313 = vmul.f32 %v153, %v153
    %v314 = vmul.f32 %v154, %v154
    %v315 = vmul.f32 %v283, 1.5
    %v316 = vmul.f32 %v284, 1.5
    %v317 = vmul.f32 %v285, 1.5
    %v318 = vmul.f32 %v286, 1.5
    %v319 = vmul.f32 %v287, 1.5
    %v320 = vmul.f32 %v288, 1.5
    %v321 = vmul.f32 %v289, 1.5
    %v322 = vmul.f32 %v290, 1.5
    %v323 = vmul.f32 %v291, 1.5
    %v324 = vmul.f32 %v292, 1.5
    %v325 = vmul.f32 %v293, 1.5
    %v326 = vmul.f32 %v294, 1.5
    %v327 = vmul.f32 %v295, 1.5
    %v328 = vmul.f32 %v296, 1.5
    %v329 = vmul.f32 %v297, 1.5
    %v330 = vmul.f32 %v298, 1.5
    %v331 = vmul.f32 %v299, 1.5
    %v332 = vmul.f32 %v300, 1.5
    %v333 = vmul.f32 %v301, 1.5
    %v334 = vmul.f32 %v302, 1.5
    %v335 = vmul.f32 %v303, 1.5
    %v336 = vmul.f32 %v304, 1.5
    %v337 = vmul.f32 %v305, 1.5
    %v338 = vmul.f32 %v306, 1.5
    %v339 = vmul.f32 %v307, 1.5
    %v340 = vmul.f32 %v308, 1.5
    %v341 = vmul.f32 %v309, 1.5
    %v342 = vmul.f32 %v310, 1.5
    %v343 = vmul.f32 %v311, 1.5
    %v344 = vmul.f32 %v312, 1.5
    %v345 = vmul.f32 %v313, 1.5
    %v346 = vmul.f32 %v314, 1.5
    %v347 = vadd.f32 %v315, 0.5
    %v348 = vadd.f32 %v316, 0.5
    %v349 = vadd.f32 %v317, 0.5
    %v350 = vadd.f32 %v318, 0.5
    %v351 = vadd.f32 %v319, 0.5
    %v352 = vadd.f32 %v320, 0.5
    %v353 = vadd.f32 %v321, 0.5
    %v354 = vadd.f32 %v322, 0.5
    %v355 = vadd.f32 %v323, 0.5
    %v356 = vadd.f32 %v324, 0.5
    %v357 = vadd.f32 %v325, 0.5
    %v358 = vadd.f32 %v326, 0.5
    %v359 = vadd.f32 %v327, 0.5
    %v360 = vadd.f32 %v328, 0.5
    %v361 = vadd.f32 %v329, 0.5
    %v362 = vadd.f32 %v330, 0.5
    %v363 = vadd.f32 %v331, 0.5
    %v364 = vadd.f32 %v332, 0.5
    %v365 = vadd.f32 %v333, 0.5
    %v366 = vadd.f32 %v334, 0.5
    %v367 = vadd.f32 %v335, 0.5
    %v368 = vadd.f32 %v336, 0.5
    %v369 = vadd.f32 %v337, 0.5
    %v370 = vadd.f32 %v338, 0.5
    %v371 = vadd.f32 %v339, 0.5
    %v372 = vadd.f32 %v340, 0.5
    %v373 = vadd.f32 %v341, 0.5
    %v374 = vadd.f32 %v342, 0.5
    %v375 = vadd.f32 %v343, 0.5
    %v376 = vadd.f32 %v344, 0.5
    %v377 = vadd.f32 %v345, 0.5
    %v378 = vadd.f32 %v346, 0.5
    %v379 = vmul.f32 %v251, %v347
    %v380 = vmul.f32 %v252, %v348
    %v381 = vmul.f32 %v253, %v349
    %v382 = vmul.f32 %v254, %v350
    %v383 = vmul.f32 %v255, %v351
    %v384 = vmul.f32 %v256, %v352
    %v385 = vmul.f32 %v257, %v353
    %v386 = vmul.f32 %v258, %v354
    %v387 = vmul.f32 %v259, %v355
    %v388 = vmul.f32 %v260, %v356
    %v389 = vmul.f32 %v261, %v357
    %v390 = vmul.f32 %v262, %v358
    %v391 = vmul.f32 %v263, %v359
    %v392 = vmul.f32 %v264, %v360
    %v393 = vmul.f32 %v265, %v361
    %v394 = vmul.f32 %v266, %v362
    %v395 = vmul.f32 %v267, %v363
    %v396 = vmul.f32 %v268, %v364
    %v397 = vmul.f32 %v269, %v365
    %v398 = vmul.f32 %v270, %v366
    %v399 = vmul.f32 %v271, %v367
    %v400 = vmul.f32 %v272, %v368
    %v401 = vmul.f32 %v273, %v369
    %v402 = vmul.f32 %v274, %v370
    %v403 = vmul.f32 %v275, %v371
    %v404 = vmul.f32 %v276, %v372
    %v405 = vmul.f32 %v277, %v373
    %v406 = vmul.f32 %v278, %v374
    %v407 = vmul.f32 %v279, %v375
    %v408 = vmul.f32 %v280, %v376
    %v409 = vmul.f32 %v281, %v377
    %v410 = vmul.f32 %v282, %v378
    %v411 = vadd.f32 %v379, %v380
    %v412 = vadd.f32 %v411, %v381
    %v413 = vadd.f32 %v412, %v382
    %v414 = vadd.f32 %v413, %v383
    %v415 = vadd.f32 %v414, %v384
    %v416 = vadd.f32 %v415, %v385
    %v417 = vadd.f32 %v416, %v386
    %v418 = vadd.f32 %v417, %v387
    %v419 = vadd.f32 %v418, %v388
    %v420 = vadd.f32 %v419, %v389
    %v421 = vadd.f32 %v420, %v390
    %v422 = vadd.f32 %v421, %v391
    %v423 = vadd.f32 %v422, %v392
    %v424 = vadd.f32 %v423, %v393
    %v425 = vadd.f32 %v424, %v394
    %v426 = vadd.f32 %v425, %v395
    %v427 = vadd.f32 %v426, %v396
    %v428 = vadd.f32 %v427, %v397
    %v429 = vadd.f32 %v428, %v398
    %v430 = vadd.f32 %v429, %v399
    %v431 = vadd.f32 %v430, %v400
    %v432 = vadd.f32 %v431, %v401
    %v433 = vadd.f32 %v432, %v402
    %v434 = vadd.f32 %v433, %v403
    %v435 = vadd.f32 %v434, %v404
    %v436 = vadd.f32 %v435, %v405
    %v437 = vadd.f32 %v436, %v406
    %v438 = vadd.f32 %v437, %v407
    %v439 = vadd.f32 %v438, %v408
    %v440 = vadd.f32 %v439, %v409
    %v441 = vadd.f32 %v440, %v410
    %v442 = vld [vmem:[#allocation8] sm:$0xff]
    %v443 = vadd.f32 %v442, %v441
    %444 = vst [vmem:[#allocation8] sm:$0xff] %v443
    // Predicated region
    $region30: #{tpu_custom_call.1} parent=1 // pred_check
      _
    $region31: #{tpu_custom_call.1} parent=1 // pred_check_branch
      %446 = sbr.rel (0) target = $region33
    $region32: #{tpu_custom_call.1} parent=1 // pred_region
      %s448 = ssub.s32 128, 128
      %449 = vsyncadd [#allocation4], %s448
      %s451 = sshll.u32 [#allocation8], 4
      %s452 = int_to_ptr.vmem [resolvable:$true] %s451
      %454 = dma.vmem_to_hbm [thread:$0]  %s452, 128, %s3, [#allocation4]
    $region33: #{tpu_custom_call.1} parent=1 // pred_fallthru
      _
    // Predicated region
    $region34: #{tpu_custom_call.1} parent=1 // pred_check
      _
    $region35: #{tpu_custom_call.1} parent=1 // pred_check_branch
      %456 = sbr.rel (0) target = $region37
    $region36: #{tpu_custom_call.1} parent=1 // pred_region
      %457 = dma.done [#allocation4], 128
    $region37: #{tpu_custom_call.1} parent=1 // pred_fallthru
      _
    %458 = vsyncpa [#allocation3], 1
    %459 = vsyncpa [#allocation6], 1
    %460 = vsyncpa [#allocation4], 1

</llo_original>
